<compile_context>
chip_gen: v6e
topology: v6e:2x2x1
jax: 0.10.0
libtpu: 0.0.40
codegen_flags: <defaults>
</compile_context>

<pallas_src>
import functools

import jax
import jax.numpy as jnp
import numpy as np
from jax.experimental import pallas as pl
from jax.experimental.pallas import tpu as pltpu


# ------------------------------ tiling helpers -------------------------------

def _choose_tn(N, J):
    """Lane-axis tile of the output / W columns, sized from a VMEM budget."""
    if N % 128 != 0:
        return N                     # small / unaligned graphs: one full-width tile
    w_col_bytes = 2 * (J * N) * 2    # double-buffered bf16 W bytes per output column
    budget = 24 * 1024 * 1024        # keeps total VMEM well under v7x's 64 MiB
    tn = (budget // w_col_bytes) // 128 * 128
    tn = max(128, min(N, tn))
    while N % tn != 0:               # need an exact divisor (N % 128 == 0 here)
        tn -= 128
    return tn


def _vmem_limit_bytes(N, TN, J, Fin, Fout):
    jn = J * N
    est = (2 * jn * TN * 2           # W tile, double-buffered (bf16)
           + 2 * Fin * N * 4         # x block, double-buffered (f32)
           + 2 * Fout * TN * 4       # pre-activation output, double-buffered (f32)
           + Fout * jn * 2           # z scratch (bf16)
           + 8 * Fout * 4            # stats outputs + accumulators
           + 2 * (J * Fout * Fin + 2 * Fin + 2 * Fout) * 4)
    return int(min(64 * 1024 * 1024, max(32 * 1024 * 1024, est * 3 // 2)))


# ----------------------------- Pallas kernels ------------------------------

def _fill_z_scratch(z_ref, fc_ref, xn, *, J, Fin, N):
    """z = concat_j(Wfc_j @ xn), stored bf16 in VMEM scratch (once per batch)."""
    if N % 128 == 0:
        # aligned per-j stores: no lane-axis concatenate at all
        for j in range(J):
            if Fin == 1:
                zj = fc_ref[j] * xn                                   # outer product (VPU)
            else:
                zj = jnp.dot(fc_ref[j], xn,
                             preferred_element_type=jnp.float32)      # (Fout, N)
            z_ref[:, j * N:(j + 1) * N] = zj.astype(jnp.bfloat16)
    else:
        # tiny-graph fallback: single concat once per batch, single full-width store
        if Fin == 1:
            parts = [fc_ref[j] * xn for j in range(J)]
        else:
            parts = [jnp.dot(fc_ref[j], xn, preferred_element_type=jnp.float32)
                     for j in range(J)]
        z = parts[0] if J == 1 else jnp.concatenate(parts, axis=-1)
        z_ref[...] = z.astype(jnp.bfloat16)


def gconv_kernel(scale_ref, shift_ref, x_ref, w_ref, fc_ref, b_ref,
                 pre_ref, s_ref, ss_ref, z_ref, s_acc, ss_acc, *, J, H1):
    """Fused [prev-layer BatchNorm] + gmul + [fc1|fc2] for one (batch, N-tile) step.

    Feature-major layout: features on sublanes, graph nodes N on lanes.

    scale/shift : (Fin, 1)      folded BN of the PREVIOUS layer (identity for layer0)
    x_ref       : (1, Fin, N)   un-normalized activations of the previous layer
    w_ref       : (1, J*N, TN)  graph operators (bf16), WcatT[j*N+m, n] = W[n, m, j]
    fc_ref      : (J, Fout, Fin) per-operator fc weight (stacked [fc1; fc2] rows)
    b_ref       : (Fout, 1)     stacked bias
    pre_ref     : (1, Fout, TN) pre-BatchNorm output tile
    s_ref/ss_ref: (1, Fout, 1)  per-batch sum / sum-of-squares (written at last tile)
    z_ref       : (Fout, J*N)   bf16 scratch, computed once per batch
    s_acc/ss_acc: (Fout, 1)     f32 scratch accumulators
    """
    t = pl.program_id(1)
    nt = pl.num_programs(1)
    Fin = x_ref.shape[1]
    N = x_ref.shape[2]

    # Per-batch work (depends only on b): previous-layer BatchNorm + the tiny
    # per-j pre-multiplies. Done once at t == 0, reused for every N tile.
    @pl.when(t == 0)
    def _per_batch_setup():
        xn = x_ref[0] * scale_ref[...] + shift_ref[...]               # (Fin, N) f32
        _fill_z_scratch(z_ref, fc_ref, xn, J=J, Fin=Fin, N=N)
        s_acc[...] = jnp.zeros_like(s_acc)
        ss_acc[...] = jnp.zeros_like(ss_acc)

    # ONE big-K (K = J*N) native bf16 x bf16 -> f32 MXU contraction per tile.
    pre = jnp.dot(z_ref[...], w_ref[0],
                  preferred_element_type=jnp.float32) + b_ref[...]

    # half-ReLU: rows [0, H1) come from fc1 (+ReLU), rows [H1, Fout) from fc2.
    row = jax.lax.broadcasted_iota(jnp.int32, pre.shape, 0)
    pre = jnp.where(row < H1, jnp.maximum(pre, 0.0), pre)
    pre_ref[0] = pre

    # BatchNorm statistics of THIS layer, accumulated in VMEM scratch across tiles.
    s_acc[...] += jnp.sum(pre, axis=-1, keepdims=True)
    ss_acc[...] += jnp.sum(pre * pre, axis=-1, keepdims=True)

    @pl.when(t == nt - 1)
    def _emit_stats():
        s_ref[0] = s_acc[...]
        ss_ref[0] = ss_acc[...]


def gconv_last_kernel(scale_ref, shift_ref, x_ref, w_ref, fc_ref, b_ref,
                      out_ref, z_ref, *, J):
    """Gconv_last: [prev-layer BatchNorm] + gmul + single Linear (no ReLU, no BN)."""
    t = pl.program_id(1)
    Fin = x_ref.shape[1]
    N = x_ref.shape[2]

    @pl.when(t == 0)
    def _per_batch_setup():
        xn = x_ref[0] * scale_ref[...] + shift_ref[...]               # (Fin, N)
        _fill_z_scratch(z_ref, fc_ref, xn, J=J, Fin=Fin, N=N)

    out_ref[0] = jnp.dot(z_ref[...], w_ref[0],
                         preferred_element_type=jnp.float32) + b_ref[...]


# ----------------------------- Pallas wrappers ------------------------------

def gconv_pallas(scale, shift, x, WcatT, fcJ, bias, *, H1):
    bs, Fin, N = x.shape
    J, Fout, _ = fcJ.shape
    JN = J * N
    TN = _choose_tn(N, J)
    nt = N // TN
    bias2 = bias.reshape(Fout, 1)
    kernel = functools.partial(gconv_kernel, J=J, H1=H1)
    return pl.pallas_call(
        kernel,
        out_shape=(jax.ShapeDtypeStruct((bs, Fout, N), jnp.float32),
                   jax.ShapeDtypeStruct((bs, Fout, 1), jnp.float32),
                   jax.ShapeDtypeStruct((bs, Fout, 1), jnp.float32)),
        grid=(bs, nt),
        in_specs=[
            pl.BlockSpec((Fin, 1), lambda b, t: (0, 0)),
            pl.BlockSpec((Fin, 1), lambda b, t: (0, 0)),
            pl.BlockSpec((1, Fin, N), lambda b, t: (b, 0, 0)),
            pl.BlockSpec((1, JN, TN), lambda b, t: (b, 0, t)),
            pl.BlockSpec((J, Fout, Fin), lambda b, t: (0, 0, 0)),
            pl.BlockSpec((Fout, 1), lambda b, t: (0, 0)),
        ],
        out_specs=(
            pl.BlockSpec((1, Fout, TN), lambda b, t: (b, 0, t)),
            pl.BlockSpec((1, Fout, 1), lambda b, t: (b, 0, 0)),
            pl.BlockSpec((1, Fout, 1), lambda b, t: (b, 0, 0)),
        ),
        scratch_shapes=[pltpu.VMEM((Fout, JN), jnp.bfloat16),
                        pltpu.VMEM((Fout, 1), jnp.float32),
                        pltpu.VMEM((Fout, 1), jnp.float32)],
        compiler_params=pltpu.CompilerParams(
            dimension_semantics=("parallel", "arbitrary"),
            vmem_limit_bytes=_vmem_limit_bytes(N, TN, J, Fin, Fout)),
    )(scale, shift, x, WcatT, fcJ, bias2)


def gconv_last_pallas(scale, shift, x, WcatT, fcJ, bias):
    bs, Fin, N = x.shape
    J, Fout, _ = fcJ.shape
    JN = J * N
    TN = _choose_tn(N, J)
    nt = N // TN
    bias2 = bias.reshape(Fout, 1)
    kernel = functools.partial(gconv_last_kernel, J=J)
    return pl.pallas_call(
        kernel,
        out_shape=jax.ShapeDtypeStruct((bs, Fout, N), jnp.float32),
        grid=(bs, nt),
        in_specs=[
            pl.BlockSpec((Fin, 1), lambda b, t: (0, 0)),
            pl.BlockSpec((Fin, 1), lambda b, t: (0, 0)),
            pl.BlockSpec((1, Fin, N), lambda b, t: (b, 0, 0)),
            pl.BlockSpec((1, JN, TN), lambda b, t: (b, 0, t)),
            pl.BlockSpec((J, Fout, Fin), lambda b, t: (0, 0, 0)),
            pl.BlockSpec((Fout, 1), lambda b, t: (0, 0)),
        ],
        out_specs=pl.BlockSpec((1, Fout, TN), lambda b, t: (b, 0, t)),
        scratch_shapes=[pltpu.VMEM((Fout, JN), jnp.bfloat16)],
        compiler_params=pltpu.CompilerParams(
            dimension_semantics=("parallel", "arbitrary"),
            vmem_limit_bytes=_vmem_limit_bytes(N, TN, J, Fin, Fout)),
    )(scale, shift, x, WcatT, fcJ, bias2)


# ------------------------- parameters & GNN forward -------------------------

def _init_linear(key, fan_in, fan_out):
    kw, kb = jax.random.split(key)
    bound = 1.0 / np.sqrt(fan_in)
    w = jax.random.uniform(kw, (fan_out, fan_in), jnp.float32, -bound, bound)
    b = jax.random.uniform(kb, (fan_out,), jnp.float32, -bound, bound)
    return w, b


def make_gnn_params(key, num_features, num_layers, J):
    """Per Gconv layer: stacked fc weight w=[fc1;fc2] (F, J*Fin), bias (F,), BN gamma/beta."""
    params = {"layers": [], "last": None}
    keys = jax.random.split(key, num_layers + 2)
    fins = [1] + [num_features] * num_layers          # layer0 + middle layers
    for i, fin in enumerate(fins):
        w, b = _init_linear(keys[i], J * fin, num_features)
        params["layers"].append(dict(
            w=w, b=b,
            gamma=jnp.ones((num_features,), jnp.float32),
            beta=jnp.zeros((num_features,), jnp.float32)))
    wl, bl = _init_linear(keys[-1], J * num_features, 1)
    params["last"] = dict(w=wl, b=bl)
    return params


def _fc_per_operator(w, J):
    """(Fout, J*Fin) -> (J, Fout, Fin): leading-dim indexing in the kernel is free."""
    Fout, JFin = w.shape
    Fin = JFin // J
    return w.reshape(Fout, J, Fin).transpose(1, 0, 2)


def gnn_forward_pallas(params, W, x):
    """W: (bs, N, N, J), x: (bs, N, 1)  ->  (bs, N, 1)"""
    bs, N, _, J = W.shape
    # One-time W preprocessing (hoisted out of the layer loop): contraction-ready
    # layout WcatT[b, j*N+m, n] = W[b, n, m, j], bf16 to halve the dominant HBM traffic.
    WcatT = jnp.transpose(W, (0, 3, 2, 1)).reshape(bs, J * N, N).astype(jnp.bfloat16)

    cur = jnp.transpose(x, (0, 2, 1))                        # feature-major (bs, 1, N)
    scale = jnp.ones((cur.shape[1], 1), jnp.float32)         # identity "BN" for layer0
    shift = jnp.zeros((cur.shape[1], 1), jnp.float32)
    cnt = bs * N
    for layer in params["layers"]:
        Fout = layer["w"].shape[0]
        fcJ = _fc_per_operator(layer["w"], J)
        H1 = Fout // 2
        pre, s_out, ss_out = gconv_pallas(scale, shift, cur, WcatT,
                                          fcJ, layer["b"], H1=H1)
        # Finish BatchNorm on (F,)-sized tensors (trivial XLA work); normalization is
        # applied inside the NEXT layer's kernel through scale/shift.
        s = jnp.sum(s_out[:, :, 0], axis=0)
        ss = jnp.sum(ss_out[:, :, 0], axis=0)
        mean = s / cnt
        var = ss / cnt - mean * mean                         # biased variance (training BN)
        inv = jax.lax.rsqrt(var + 1e-5)
        scale = (layer["gamma"] * inv)[:, None]
        shift = (layer["beta"] - mean * layer["gamma"] * inv)[:, None]
        cur = pre
    fcJ_last = _fc_per_operator(params["last"]["w"], J)
    outT = gconv_last_pallas(scale, shift, cur, WcatT, fcJ_last, params["last"]["b"])
    return jnp.transpose(outT, (0, 2, 1))                    # back to (bs, N, 1)


# ----------------------------- pure-JAX reference ---------------------------

def _gmul_ref(W, x):
    y = jnp.einsum("bnmj,bmf->bnjf", W, x)
    bs, N, J, F = y.shape
    return y.reshape(bs, N, J * F)


def gnn_forward_ref(params, W, x):
    cur = x
    for layer in params["layers"]:
        y = _gmul_ref(W, cur)
        bs, N, JF = y.shape
        h = y.reshape(bs * N, JF) @ layer["w"].T + layer["b"]
        H1 = layer["w"].shape[0] // 2
        h = jnp.concatenate([jnp.maximum(h[:, :H1], 0.0), h[:, H1:]], axis=-1)
        mean = h.mean(axis=0, keepdims=True)
        var = ((h - mean) ** 2).mean(axis=0, keepdims=True)
        h = (h - mean) / jnp.sqrt(var + 1e-5) * layer["gamma"] + layer["beta"]
        cur = h.reshape(bs, N, -1)
    y = _gmul_ref(W, cur)
    bs, N, JF = y.shape
    out = y.reshape(bs * N, JF) @ params["last"]["w"].T + params["last"]["b"]
    return out.reshape(bs, N, 1)


# ----------------------------------- main ------------------------------------

if __name__ == "__main__":
    bs, N, J = 2, 16, 3
    num_features, num_layers = 8, 2

    key = jax.random.PRNGKey(0)
    k_params, k_W, k_x = jax.random.split(key, 3)

    params = make_gnn_params(k_params, num_features, num_layers, J)
    # synthetic graph operators (e.g. adjacency powers), scaled for sane magnitudes
    W = jax.random.uniform(k_W, (bs, N, N, J), jnp.float32) / N
    x = jax.random.normal(k_x, (bs, N, 1), jnp.float32)

    out = gnn_forward_pallas(params, W, x)
    out = jax.block_until_ready(out)
    assert out.shape == (bs, N, 1) and out.dtype == jnp.float32

    ref = gnn_forward_ref(params, W, x)
    np.testing.assert_allclose(np.asarray(out), np.asarray(ref), rtol=5e-2, atol=5e-2)

    print("KERNEL_OK")
</pallas_src>

<mosaic_0001>
module attributes {stable_mosaic.version = 11 : i64} {
  func.func @gconv_kernel(%arg0: i32, %arg1: i32, %arg2: memref<1x1xf32, #tpu.memory_space<vmem>>, %arg3: memref<1x1xf32, #tpu.memory_space<vmem>>, %arg4: memref<1x1x16xf32, #tpu.memory_space<vmem>>, %arg5: memref<1x48x16xbf16, #tpu.memory_space<vmem>>, %arg6: memref<3x8x1xf32, #tpu.memory_space<vmem>>, %arg7: memref<8x1xf32, #tpu.memory_space<vmem>>, %arg8: memref<1x8x16xf32, #tpu.memory_space<vmem>>, %arg9: memref<1x8x1xf32, #tpu.memory_space<vmem>>, %arg10: memref<1x8x1xf32, #tpu.memory_space<vmem>>, %arg11: memref<8x48xbf16, #tpu.memory_space<vmem>>, %arg12: memref<8x1xf32, #tpu.memory_space<vmem>>, %arg13: memref<8x1xf32, #tpu.memory_space<vmem>>) attributes {dimension_semantics = [#tpu.dimension_semantics<parallel>, #tpu.dimension_semantics<arbitrary>], iteration_bounds = array<i64: 2, 1>, scalar_prefetch = 0 : i64, scratch_operands = 3 : i64, tpu.core_type = #tpu.core_type<tc>, window_params = [{pipeline_mode = #tpu.pipeline_mode<synchronous>, transform_indices = @transform_0, window_bounds = array<i64: 1, 1>}, {pipeline_mode = #tpu.pipeline_mode<synchronous>, transform_indices = @transform_1, window_bounds = array<i64: 1, 1>}, {transform_indices = @transform_2, window_bounds = array<i64: 1, 1, 16>}, {transform_indices = @transform_3, window_bounds = array<i64: 1, 48, 16>}, {pipeline_mode = #tpu.pipeline_mode<synchronous>, transform_indices = @transform_4, window_bounds = array<i64: 3, 8, 1>}, {pipeline_mode = #tpu.pipeline_mode<synchronous>, transform_indices = @transform_5, window_bounds = array<i64: 8, 1>}, {transform_indices = @transform_6, window_bounds = array<i64: 1, 8, 16>}, {transform_indices = @transform_7, window_bounds = array<i64: 1, 8, 1>}, {transform_indices = @transform_8, window_bounds = array<i64: 1, 8, 1>}]} {
    %c0_i32 = arith.constant 0 : i32
    %0 = arith.cmpi eq, %arg1, %c0_i32 : i32
    %1 = arith.extui %0 : i1 to i32
    %c0_i32_0 = arith.constant 0 : i32
    %2 = arith.cmpi ne, %1, %c0_i32_0 : i32
    scf.if %2 {
      %c0_23 = arith.constant 0 : index
      %c0_24 = arith.constant 0 : index
      %c0_25 = arith.constant 0 : index
      %33 = vector.load %arg4[%c0_23, %c0_24, %c0_25] : memref<1x1x16xf32, #tpu.memory_space<vmem>>, vector<1x1x16xf32>
      %34 = vector.shape_cast %33 : vector<1x1x16xf32> to vector<1x16xf32>
      %c0_26 = arith.constant 0 : index
      %c0_27 = arith.constant 0 : index
      %35 = vector.load %arg2[%c0_26, %c0_27] : memref<1x1xf32, #tpu.memory_space<vmem>>, vector<1x1xf32>
      %36 = vector.broadcast %35 : vector<1x1xf32> to vector<1x16xf32>
      %37 = arith.mulf %34, %36 : vector<1x16xf32>
      %c0_28 = arith.constant 0 : index
      %c0_29 = arith.constant 0 : index
      %38 = vector.load %arg3[%c0_28, %c0_29] : memref<1x1xf32, #tpu.memory_space<vmem>>, vector<1x1xf32>
      %39 = vector.broadcast %38 : vector<1x1xf32> to vector<1x16xf32>
      %40 = arith.addf %37, %39 : vector<1x16xf32>
      %c0_30 = arith.constant 0 : index
      %c0_31 = arith.constant 0 : index
      %c0_32 = arith.constant 0 : index
      %41 = vector.load %arg6[%c0_30, %c0_31, %c0_32] : memref<3x8x1xf32, #tpu.memory_space<vmem>>, vector<1x8x1xf32>
      %42 = vector.shape_cast %41 : vector<1x8x1xf32> to vector<8x1xf32>
      %43 = vector.broadcast %42 : vector<8x1xf32> to vector<8x16xf32>
      %44 = vector.broadcast %40 : vector<1x16xf32> to vector<8x16xf32>
      %45 = arith.mulf %43, %44 : vector<8x16xf32>
      %c1 = arith.constant 1 : index
      %c0_33 = arith.constant 0 : index
      %c0_34 = arith.constant 0 : index
      %46 = vector.load %arg6[%c1, %c0_33, %c0_34] : memref<3x8x1xf32, #tpu.memory_space<vmem>>, vector<1x8x1xf32>
      %47 = vector.shape_cast %46 : vector<1x8x1xf32> to vector<8x1xf32>
      %48 = vector.broadcast %47 : vector<8x1xf32> to vector<8x16xf32>
      %49 = vector.broadcast %40 : vector<1x16xf32> to vector<8x16xf32>
      %50 = arith.mulf %48, %49 : vector<8x16xf32>
      %c2 = arith.constant 2 : index
      %c0_35 = arith.constant 0 : index
      %c0_36 = arith.constant 0 : index
      %51 = vector.load %arg6[%c2, %c0_35, %c0_36] : memref<3x8x1xf32, #tpu.memory_space<vmem>>, vector<1x8x1xf32>
      %52 = vector.shape_cast %51 : vector<1x8x1xf32> to vector<8x1xf32>
      %53 = vector.broadcast %52 : vector<8x1xf32> to vector<8x16xf32>
      %54 = vector.broadcast %40 : vector<1x16xf32> to vector<8x16xf32>
      %55 = arith.mulf %53, %54 : vector<8x16xf32>
      %56 = tpu.concatenate %45, %50, %55 in 1 : vector<8x16xf32>, vector<8x16xf32>, vector<8x16xf32> -> vector<8x48xf32>
      %57 = arith.truncf %56 : vector<8x48xf32> to vector<8x48xbf16>
      %c0_37 = arith.constant 0 : index
      %c0_38 = arith.constant 0 : index
      %58 = vector.load %arg11[%c0_37, %c0_38] : memref<8x48xbf16, #tpu.memory_space<vmem>>, vector<8x48xbf16>
      tpu.vector_store %arg11[%c0_37, %c0_38], %57 {strides = array<i32>} : memref<8x48xbf16, #tpu.memory_space<vmem>>, vector<8x48xbf16>,
      %cst_39 = arith.constant 0.000000e+00 : f32
      %59 = vector.broadcast %cst_39 : f32 to vector<8x1xf32>
      %c0_40 = arith.constant 0 : index
      %c0_41 = arith.constant 0 : index
      %60 = vector.load %arg12[%c0_40, %c0_41] : memref<8x1xf32, #tpu.memory_space<vmem>>, vector<8x1xf32>
      tpu.vector_store %arg12[%c0_40, %c0_41], %59 {strides = array<i32>} : memref<8x1xf32, #tpu.memory_space<vmem>>, vector<8x1xf32>,
      %cst_42 = arith.constant 0.000000e+00 : f32
      %61 = vector.broadcast %cst_42 : f32 to vector<8x1xf32>
      %c0_43 = arith.constant 0 : index
      %c0_44 = arith.constant 0 : index
      %62 = vector.load %arg13[%c0_43, %c0_44] : memref<8x1xf32, #tpu.memory_space<vmem>>, vector<8x1xf32>
      tpu.vector_store %arg13[%c0_43, %c0_44], %61 {strides = array<i32>} : memref<8x1xf32, #tpu.memory_space<vmem>>, vector<8x1xf32>,
    } else {
    }
    %c0 = arith.constant 0 : index
    %c0_1 = arith.constant 0 : index
    %3 = vector.load %arg11[%c0, %c0_1] : memref<8x48xbf16, #tpu.memory_space<vmem>>, vector<8x48xbf16>
    %c0_2 = arith.constant 0 : index
    %c0_3 = arith.constant 0 : index
    %c0_4 = arith.constant 0 : index
    %4 = vector.load %arg5[%c0_2, %c0_3, %c0_4] : memref<1x48x16xbf16, #tpu.memory_space<vmem>>, vector<1x48x16xbf16>
    %5 = vector.shape_cast %4 : vector<1x48x16xbf16> to vector<48x16xbf16>
    %cst = arith.constant dense<0.000000e+00> : vector<8x16xf32>
    %6 = tpu.matmul %3, %5, %cst {dimension_numbers = #tpu.dot_dimension_numbers<[1], [0], [0], [1], [0, 0, 1, 1], [], []>} : vector<8x48xbf16>, vector<48x16xbf16>, vector<8x16xf32> -> vector<8x16xf32>
    %c0_5 = arith.constant 0 : index
    %c0_6 = arith.constant 0 : index
    %7 = vector.load %arg7[%c0_5, %c0_6] : memref<8x1xf32, #tpu.memory_space<vmem>>, vector<8x1xf32>
    %8 = vector.broadcast %7 : vector<8x1xf32> to vector<8x16xf32>
    %9 = arith.addf %6, %8 : vector<8x16xf32>
    %10 = tpu.iota {dimensions = array<i32: 0>} : vector<8x16xi32>
    %c4_i32 = arith.constant 4 : i32
    %11 = vector.broadcast %c4_i32 : i32 to vector<8x16xi32>
    %12 = arith.cmpi slt, %10, %11 : vector<8x16xi32>
    %cst_7 = arith.constant 0.000000e+00 : f32
    %13 = vector.broadcast %cst_7 : f32 to vector<8x16xf32>
    %14 = arith.maximumf %9, %13 : vector<8x16xf32>
    %15 = arith.select %12, %14, %9 : vector<8x16xi1>, vector<8x16xf32>
    %c0_8 = arith.constant 0 : index
    %c0_9 = arith.constant 0 : index
    %c0_10 = arith.constant 0 : index
    %16 = vector.load %arg8[%c0_8, %c0_9, %c0_10] : memref<1x8x16xf32, #tpu.memory_space<vmem>>, vector<1x8x16xf32>
    %17 = vector.shape_cast %16 : vector<1x8x16xf32> to vector<8x16xf32>
    %18 = vector.shape_cast %15 : vector<8x16xf32> to vector<1x8x16xf32>
    tpu.vector_store %arg8[%c0_8, %c0_9, %c0_10], %18 {strides = array<i32>} : memref<1x8x16xf32, #tpu.memory_space<vmem>>, vector<1x8x16xf32>,
    %c0_11 = arith.constant 0 : index
    %c0_12 = arith.constant 0 : index
    %19 = vector.load %arg12[%c0_11, %c0_12] : memref<8x1xf32, #tpu.memory_space<vmem>>, vector<8x1xf32>
    %cst_13 = arith.constant dense<0.000000e+00> : vector<8xf32>
    %20 = vector.multi_reduction <add>, %15, %cst_13 [1] : vector<8x16xf32> to vector<8xf32>
    %21 = vector.shape_cast %20 : vector<8xf32> to vector<8x1xf32>
    %22 = arith.addf %19, %21 : vector<8x1xf32>
    %c0_14 = arith.constant 0 : index
    %c0_15 = arith.constant 0 : index
    %23 = vector.load %arg12[%c0_14, %c0_15] : memref<8x1xf32, #tpu.memory_space<vmem>>, vector<8x1xf32>
    tpu.vector_store %arg12[%c0_14, %c0_15], %22 {strides = array<i32>} : memref<8x1xf32, #tpu.memory_space<vmem>>, vector<8x1xf32>,
    %c0_16 = arith.constant 0 : index
    %c0_17 = arith.constant 0 : index
    %24 = vector.load %arg13[%c0_16, %c0_17] : memref<8x1xf32, #tpu.memory_space<vmem>>, vector<8x1xf32>
    %25 = arith.mulf %15, %15 : vector<8x16xf32>
    %cst_18 = arith.constant dense<0.000000e+00> : vector<8xf32>
    %26 = vector.multi_reduction <add>, %25, %cst_18 [1] : vector<8x16xf32> to vector<8xf32>
    %27 = vector.shape_cast %26 : vector<8xf32> to vector<8x1xf32>
    %28 = arith.addf %24, %27 : vector<8x1xf32>
    %c0_19 = arith.constant 0 : index
    %c0_20 = arith.constant 0 : index
    %29 = vector.load %arg13[%c0_19, %c0_20] : memref<8x1xf32, #tpu.memory_space<vmem>>, vector<8x1xf32>
    tpu.vector_store %arg13[%c0_19, %c0_20], %28 {strides = array<i32>} : memref<8x1xf32, #tpu.memory_space<vmem>>, vector<8x1xf32>,
    %c0_i32_21 = arith.constant 0 : i32
    %30 = arith.cmpi eq, %arg1, %c0_i32_21 : i32
    %31 = arith.extui %30 : i1 to i32
    %c0_i32_22 = arith.constant 0 : i32
    %32 = arith.cmpi ne, %31, %c0_i32_22 : i32
    scf.if %32 {
      %c0_23 = arith.constant 0 : index
      %c0_24 = arith.constant 0 : index
      %33 = vector.load %arg12[%c0_23, %c0_24] : memref<8x1xf32, #tpu.memory_space<vmem>>, vector<8x1xf32>
      %c0_25 = arith.constant 0 : index
      %c0_26 = arith.constant 0 : index
      %c0_27 = arith.constant 0 : index
      %34 = vector.load %arg9[%c0_25, %c0_26, %c0_27] : memref<1x8x1xf32, #tpu.memory_space<vmem>>, vector<1x8x1xf32>
      %35 = vector.shape_cast %34 : vector<1x8x1xf32> to vector<8x1xf32>
      %36 = vector.shape_cast %33 : vector<8x1xf32> to vector<1x8x1xf32>
      tpu.vector_store %arg9[%c0_25, %c0_26, %c0_27], %36 {strides = array<i32>} : memref<1x8x1xf32, #tpu.memory_space<vmem>>, vector<1x8x1xf32>,
      %c0_28 = arith.constant 0 : index
      %c0_29 = arith.constant 0 : index
      %37 = vector.load %arg13[%c0_28, %c0_29] : memref<8x1xf32, #tpu.memory_space<vmem>>, vector<8x1xf32>
      %c0_30 = arith.constant 0 : index
      %c0_31 = arith.constant 0 : index
      %c0_32 = arith.constant 0 : index
      %38 = vector.load %arg10[%c0_30, %c0_31, %c0_32] : memref<1x8x1xf32, #tpu.memory_space<vmem>>, vector<1x8x1xf32>
      %39 = vector.shape_cast %38 : vector<1x8x1xf32> to vector<8x1xf32>
      %40 = vector.shape_cast %37 : vector<8x1xf32> to vector<1x8x1xf32>
      tpu.vector_store %arg10[%c0_30, %c0_31, %c0_32], %40 {strides = array<i32>} : memref<1x8x1xf32, #tpu.memory_space<vmem>>, vector<1x8x1xf32>,
    } else {
    }
    return
  }
  func.func @transform_0(%arg0: i32, %arg1: i32) -> (i32, i32) {
    %c0_i32 = arith.constant 0 : i32
    %c0_i32_0 = arith.constant 0 : i32
    %c0_i32_1 = arith.constant 0 : i32
    return %c0_i32, %c0_i32_0 : i32, i32
  }
  func.func @transform_1(%arg0: i32, %arg1: i32) -> (i32, i32) {
    %c0_i32 = arith.constant 0 : i32
    %c0_i32_0 = arith.constant 0 : i32
    %c0_i32_1 = arith.constant 0 : i32
    return %c0_i32, %c0_i32_0 : i32, i32
  }
  func.func @transform_2(%arg0: i32, %arg1: i32) -> (i32, i32, i32) {
    %c0_i32 = arith.constant 0 : i32
    %c0_i32_0 = arith.constant 0 : i32
    %c0_i32_1 = arith.constant 0 : i32
    return %arg0, %c0_i32, %c0_i32_0 : i32, i32, i32
  }
  func.func @transform_3(%arg0: i32, %arg1: i32) -> (i32, i32, i32) {
    %c0_i32 = arith.constant 0 : i32
    %c0_i32_0 = arith.constant 0 : i32
    return %arg0, %c0_i32, %arg1 : i32, i32, i32
  }
  func.func @transform_4(%arg0: i32, %arg1: i32) -> (i32, i32, i32) {
    %c0_i32 = arith.constant 0 : i32
    %c0_i32_0 = arith.constant 0 : i32
    %c0_i32_1 = arith.constant 0 : i32
    %c0_i32_2 = arith.constant 0 : i32
    return %c0_i32, %c0_i32_0, %c0_i32_1 : i32, i32, i32
  }
  func.func @transform_5(%arg0: i32, %arg1: i32) -> (i32, i32) {
    %c0_i32 = arith.constant 0 : i32
    %c0_i32_0 = arith.constant 0 : i32
    %c0_i32_1 = arith.constant 0 : i32
    return %c0_i32, %c0_i32_0 : i32, i32
  }
  func.func @transform_6(%arg0: i32, %arg1: i32) -> (i32, i32, i32) {
    %c0_i32 = arith.constant 0 : i32
    %c0_i32_0 = arith.constant 0 : i32
    return %arg0, %c0_i32, %arg1 : i32, i32, i32
  }
  func.func @transform_7(%arg0: i32, %arg1: i32) -> (i32, i32, i32) {
    %c0_i32 = arith.constant 0 : i32
    %c0_i32_0 = arith.constant 0 : i32
    %c0_i32_1 = arith.constant 0 : i32
    return %arg0, %c0_i32, %c0_i32_0 : i32, i32, i32
  }
  func.func @transform_8(%arg0: i32, %arg1: i32) -> (i32, i32, i32) {
    %c0_i32 = arith.constant 0 : i32
    %c0_i32_0 = arith.constant 0 : i32
    %c0_i32_1 = arith.constant 0 : i32
    return %arg0, %c0_i32, %c0_i32_0 : i32, i32, i32
  }
}

</mosaic_0001>

<llo_original>
// kernel: tpu_custom_call.1
$region0: #{tpu_custom_call.1}
  #allocation0 [shape = 'u32[]', space=smem, size = 0x4, offset = 0x4, fixed_abs, tag = 'smem constant byte address 0x4 - core index']
  #allocation1 [shape = 'u32[144,128]{1,0:T(1,128)}', space=vmem, size = 0x12000, scoped, tag = 'internal scratch']
  #allocation2 [shape = 'bf16[8,48]{1,0:T(8,128)(2,1)}', space=vmem, size = 0x800, scoped, tag = 'scratch operand']
  #allocation3 [shape = 'f32[8,1]{1,0:T(8,128)}', space=vmem, size = 0x1000, scoped, tag = 'scratch operand']
  #allocation4 [shape = 'f32[8,1]{1,0:T(8,128)}', space=vmem, size = 0x1000, scoped, tag = 'scratch operand']
  #allocation5 [shape = 'f32[1,1]{1,0:T(1,128)S(1)}', space=vmem, size = 0x200, scoped, tag = 'scoped memory for tpu_custom_call.1']
  #allocation6 [shape = 'f32[1,1]{1,0:T(1,128)S(1)}', space=vmem, size = 0x200, scoped, tag = 'scoped memory for tpu_custom_call.1']
  %s0 = inlined_call_operand.<no memory space> [shape: f32[1,1], index: 0, kind: input, shape index: {}]
  %s1 = inlined_call_operand.<no memory space> [shape: f32[1,1], index: 1, kind: input, shape index: {}]
  %s2 = inlined_call_operand.vmem [shape: f32[2,1,16], index: 2, kind: input, shape index: {}]
  %s3 = inlined_call_operand.vmem [shape: bf16[2,48,16], index: 3, kind: input, shape index: {}]
  %s4 = inlined_call_operand.vmem [shape: f32[3,8,1], index: 4, kind: input, shape index: {}]
  %s5 = inlined_call_operand.vmem [shape: f32[8,1], index: 5, kind: input, shape index: {}]
  %s6 = inlined_call_operand.hbm [shape: f32[2,8,16], index: 6, kind: output, shape index: {0}]
  %s7 = inlined_call_operand.vmem [shape: f32[2,8,1], index: 7, kind: output, shape index: {1}]
  %s8 = inlined_call_operand.vmem [shape: f32[2,8,1], index: 8, kind: output, shape index: {2}]
  %9 = xla_tuple %s6, %s7, %s8
  %s10 = sld [smem:[#allocation0]]
  $region81: #{tpu_custom_call.1} parent=0
    _
  %s12 = ssub.s32 1, %s10
  %s13 = scalar_select 0, %s12, %s10
  %v14 = vstv %s0
  %15 = vst [vmem:[#allocation5] sm:$0x1] %v14
  %v16 = vstv %s1
  %17 = vst [vmem:[#allocation6] sm:$0x1] %v16
  $region1: #{tpu_custom_call.1} parent=0
    #allocation7 [shape = 'u8[8192]{0}', space=vmem, size = 0x2000, scoped, tag = 'output window, operand 0']
    #allocation8 [shape = 's32[2]{0}', space=sflag, size = 0x8, scoped, tag = 'scoped memory for tpu_custom_call.1']
    %18 = vsyncpa [#allocation8], 0
    %s19 = scalar_lea.sflag [#allocation8], 1
    %20 = vsyncpa %s19, 0
    loop: start=0, step=1, limit=4
    $region2: #{tpu_custom_call.1} parent=1 // loop_pre_header
      _
    $region3: #{tpu_custom_call.1} parent=1 // loop_header
      %s22 = sphi 0, %s26
      %p23 = scmp.ge.s32.totalorder %s22, 4
      %s29 = sphi 0, %s41
      %s30 = sphi 0, %s37
      %s31 = sphi 0, %s29
      %s32 = sphi 0, %s30
      %s33 = sphi 0, %s31
      %s34 = sphi 0, %s32
      %s42 = sphi 0, %s42
      %s44 = sphi 0, %s42
      %s45 = sphi 0, %s44
      %s59 = sphi 0, %s45
      %s63 = sphi 0, %s63
      %s65 = sphi 0, %s63
      %s66 = sphi 0, %s65
      %s80 = sphi 0, %s66
      %s86 = sphi 0, %s88
      %s89 = sphi 0, %s86
      %s90 = sphi 0, %s89
      %s106 = sphi 0, %s90
      %s114 = sphi 0, %s116
      %s117 = sphi 0, %s114
      %s118 = sphi 0, %s117
      %s134 = sphi 0, %s118
      %s138 = sphi 0, %s138
      %s140 = sphi 0, %s138
      %s141 = sphi 0, %s140
      %s155 = sphi 0, %s141
      %s159 = sphi 0, %s159
      %s161 = sphi 0, %s159
      %s162 = sphi 0, %s161
      %s176 = sphi 0, %s162
      %s184 = sphi 0, %s186
      %s187 = sphi 0, %s184
      %s188 = sphi 0, %s187
      %s204 = sphi 0, %s188
      %s210 = sphi 0, %s212
      %s213 = sphi 0, %s210
      %s214 = sphi 0, %s213
      %s230 = sphi 0, %s214
      %s236 = sphi 0, %s238
      %s239 = sphi 0, %s236
      %s240 = sphi 0, %s239
      %s256 = sphi 0, %s240
    $region4: #{tpu_custom_call.1} parent=1 // loop_header_branch
      %25 = sbr.rel (%p23) target = $region8
    $region5: #{tpu_custom_call.1} parent=1 // loop_body
      %s27 = ssub.s32 %s22, 1
      %s28 = ssub.s32 %s22, 2
      %s35 = sadd.s32 1, %s30
      %p36 = scmp.ge.s32.totalorder %s35, 1
      %s37 = scalar_select %p36, 0, %s35
      %s38 = sadd.s32 1, %s29
      %s39 = scalar_select %p36, %s38, %s29
      %p40 = scmp.ge.s32.totalorder %s39, 2
      %s41 = scalar_select %p40, 0, %s39
      %s43 = sadd.s32 %s42, 1
      %p46 = scmp.eq.s32.totalorder %s22, 1
      %p47 = scmp.ne.s32.totalorder %s42, %s44
      %p48 = scmp.eq.s32.totalorder %s22, 0
      %p49 = por %p47, %p48
      %p50 = scmp.ne.s32.totalorder %s42, %s44
      %p51 = scmp.eq.s32.totalorder %s27, 1
      %p52 = por %p50, %p51
      %p53 = scmp.ne.s32.totalorder %s44, %s45
      %p54 = scmp.eq.s32.totalorder %s27, 0
      %p55 = por %p53, %p54
      %p56 = scmp.ne.s32.totalorder %s44, %s45
      %p57 = scmp.eq.s32.totalorder %s28, 1
      %p58 = por %p56, %p57
      %p60 = scmp.ne.s32.totalorder %s45, %s59
      %p61 = scmp.eq.s32.totalorder %s28, 0
      %p62 = por %p60, %p61
      %s64 = sadd.s32 %s63, 1
      %p67 = scmp.eq.s32.totalorder %s22, 1
      %p68 = scmp.ne.s32.totalorder %s63, %s65
      %p69 = scmp.eq.s32.totalorder %s22, 0
      %p70 = por %p68, %p69
      %p71 = scmp.ne.s32.totalorder %s63, %s65
      %p72 = scmp.eq.s32.totalorder %s27, 1
      %p73 = por %p71, %p72
      %p74 = scmp.ne.s32.totalorder %s65, %s66
      %p75 = scmp.eq.s32.totalorder %s27, 0
      %p76 = por %p74, %p75
      %p77 = scmp.ne.s32.totalorder %s65, %s66
      %p78 = scmp.eq.s32.totalorder %s28, 1
      %p79 = por %p77, %p78
      %p81 = scmp.ne.s32.totalorder %s66, %s80
      %p82 = scmp.eq.s32.totalorder %s28, 0
      %p83 = por %p81, %p82
      %s84 = ssub.s32 %s29, %s41
      %p85 = scmp.eq.s32.totalorder %s84, 0
      %s87 = sadd.s32 %s86, 1
      %s88 = scalar_select %p85, %s86, %s87
      %p91 = pneg %p85
      %p92 = scmp.eq.s32.totalorder %s22, 1
      %p93 = por %p91, %p92
      %p94 = scmp.ne.s32.totalorder %s86, %s89
      %p95 = scmp.eq.s32.totalorder %s22, 0
      %p96 = por %p94, %p95
      %p97 = scmp.ne.s32.totalorder %s86, %s89
      %p98 = scmp.eq.s32.totalorder %s27, 1
      %p99 = por %p97, %p98
      %p100 = scmp.ne.s32.totalorder %s89, %s90
      %p101 = scmp.eq.s32.totalorder %s27, 0
      %p102 = por %p100, %p101
      %p103 = scmp.ne.s32.totalorder %s89, %s90
      %p104 = scmp.eq.s32.totalorder %s28, 1
      %p105 = por %p103, %p104
      %p107 = scmp.ne.s32.totalorder %s90, %s106
      %p108 = scmp.eq.s32.totalorder %s28, 0
      %p109 = por %p107, %p108
      %s110 = ssub.s32 %s29, %s41
      %s111 = ssub.s32 %s30, %s37
      %s112 = sor.u32 %s110, %s111
      %p113 = scmp.eq.s32.totalorder %s112, 0
      %s115 = sadd.s32 %s114, 1
      %s116 = scalar_select %p113, %s114, %s115
      %p119 = pneg %p113
      %p120 = scmp.eq.s32.totalorder %s22, 1
      %p121 = por %p119, %p120
      %p122 = scmp.ne.s32.totalorder %s114, %s117
      %p123 = scmp.eq.s32.totalorder %s22, 0
      %p124 = por %p122, %p123
      %p125 = scmp.ne.s32.totalorder %s114, %s117
      %p126 = scmp.eq.s32.totalorder %s27, 1
      %p127 = por %p125, %p126
      %p128 = scmp.ne.s32.totalorder %s117, %s118
      %p129 = scmp.eq.s32.totalorder %s27, 0
      %p130 = por %p128, %p129
      %p131 = scmp.ne.s32.totalorder %s117, %s118
      %p132 = scmp.eq.s32.totalorder %s28, 1
      %p133 = por %p131, %p132
      %p135 = scmp.ne.s32.totalorder %s118, %s134
      %p136 = scmp.eq.s32.totalorder %s28, 0
      %p137 = por %p135, %p136
      %s139 = sadd.s32 %s138, 1
      %p142 = scmp.eq.s32.totalorder %s22, 1
      %p143 = scmp.ne.s32.totalorder %s138, %s140
      %p144 = scmp.eq.s32.totalorder %s22, 0
      %p145 = por %p143, %p144
      %p146 = scmp.ne.s32.totalorder %s138, %s140
      %p147 = scmp.eq.s32.totalorder %s27, 1
      %p148 = por %p146, %p147
      %p149 = scmp.ne.s32.totalorder %s140, %s141
      %p150 = scmp.eq.s32.totalorder %s27, 0
      %p151 = por %p149, %p150
      %p152 = scmp.ne.s32.totalorder %s140, %s141
      %p153 = scmp.eq.s32.totalorder %s28, 1
      %p154 = por %p152, %p153
      %p156 = scmp.ne.s32.totalorder %s141, %s155
      %p157 = scmp.eq.s32.totalorder %s28, 0
      %p158 = por %p156, %p157
      %s160 = sadd.s32 %s159, 1
      %p163 = scmp.eq.s32.totalorder %s22, 1
      %p164 = scmp.ne.s32.totalorder %s159, %s161
      %p165 = scmp.eq.s32.totalorder %s22, 0
      %p166 = por %p164, %p165
      %p167 = scmp.ne.s32.totalorder %s159, %s161
      %p168 = scmp.eq.s32.totalorder %s27, 1
      %p169 = por %p167, %p168
      %p170 = scmp.ne.s32.totalorder %s161, %s162
      %p171 = scmp.eq.s32.totalorder %s27, 0
      %p172 = por %p170, %p171
      %p173 = scmp.ne.s32.totalorder %s161, %s162
      %p174 = scmp.eq.s32.totalorder %s28, 1
      %p175 = por %p173, %p174
      %p177 = scmp.ne.s32.totalorder %s162, %s176
      %p178 = scmp.eq.s32.totalorder %s28, 0
      %p179 = por %p177, %p178
      %s180 = ssub.s32 %s29, %s41
      %s181 = ssub.s32 %s30, %s37
      %s182 = sor.u32 %s180, %s181
      %p183 = scmp.eq.s32.totalorder %s182, 0
      %s185 = sadd.s32 %s184, 1
      %s186 = scalar_select %p183, %s184, %s185
      %p189 = pneg %p183
      %p190 = scmp.eq.s32.totalorder %s22, 1
      %p191 = por %p189, %p190
      %p192 = scmp.ne.s32.totalorder %s184, %s187
      %p193 = scmp.eq.s32.totalorder %s22, 0
      %p194 = por %p192, %p193
      %p195 = scmp.ne.s32.totalorder %s184, %s187
      %p196 = scmp.eq.s32.totalorder %s27, 1
      %p197 = por %p195, %p196
      %p198 = scmp.ne.s32.totalorder %s187, %s188
      %p199 = scmp.eq.s32.totalorder %s27, 0
      %p200 = por %p198, %p199
      %p201 = scmp.ne.s32.totalorder %s187, %s188
      %p202 = scmp.eq.s32.totalorder %s28, 1
      %p203 = por %p201, %p202
      %p205 = scmp.ne.s32.totalorder %s188, %s204
      %p206 = scmp.eq.s32.totalorder %s28, 0
      %p207 = por %p205, %p206
      %s208 = ssub.s32 %s29, %s41
      %p209 = scmp.eq.s32.totalorder %s208, 0
      %s211 = sadd.s32 %s210, 1
      %s212 = scalar_select %p209, %s210, %s211
      %p215 = pneg %p209
      %p216 = scmp.eq.s32.totalorder %s22, 1
      %p217 = por %p215, %p216
      %p218 = scmp.ne.s32.totalorder %s210, %s213
      %p219 = scmp.eq.s32.totalorder %s22, 0
      %p220 = por %p218, %p219
      %p221 = scmp.ne.s32.totalorder %s210, %s213
      %p222 = scmp.eq.s32.totalorder %s27, 1
      %p223 = por %p221, %p222
      %p224 = scmp.ne.s32.totalorder %s213, %s214
      %p225 = scmp.eq.s32.totalorder %s27, 0
      %p226 = por %p224, %p225
      %p227 = scmp.ne.s32.totalorder %s213, %s214
      %p228 = scmp.eq.s32.totalorder %s28, 1
      %p229 = por %p227, %p228
      %p231 = scmp.ne.s32.totalorder %s214, %s230
      %p232 = scmp.eq.s32.totalorder %s28, 0
      %p233 = por %p231, %p232
      %s234 = ssub.s32 %s29, %s41
      %p235 = scmp.eq.s32.totalorder %s234, 0
      %s237 = sadd.s32 %s236, 1
      %s238 = scalar_select %p235, %s236, %s237
      %p241 = pneg %p235
      %p242 = scmp.eq.s32.totalorder %s22, 1
      %p243 = por %p241, %p242
      %p244 = scmp.ne.s32.totalorder %s236, %s239
      %p245 = scmp.eq.s32.totalorder %s22, 0
      %p246 = por %p244, %p245
      %p247 = scmp.ne.s32.totalorder %s236, %s239
      %p248 = scmp.eq.s32.totalorder %s27, 1
      %p249 = por %p247, %p248
      %p250 = scmp.ne.s32.totalorder %s239, %s240
      %p251 = scmp.eq.s32.totalorder %s27, 0
      %p252 = por %p250, %p251
      %p253 = scmp.ne.s32.totalorder %s239, %s240
      %p254 = scmp.eq.s32.totalorder %s28, 1
      %p255 = por %p253, %p254
      %p257 = scmp.ne.s32.totalorder %s240, %s256
      %p258 = scmp.eq.s32.totalorder %s28, 0
      %p259 = por %p257, %p258
      %p260 = scmp.le.s32.totalorder 1, %s22
      %p261 = scmp.lt.s32.totalorder %s22, 3
      %p262 = pnand %p260, %p261
      %p263 = pneg %p262
      // Predicated region
      $region9: #{tpu_custom_call.1} parent=5 // pred_check
        _
      $region10: #{tpu_custom_call.1} parent=5 // pred_check_branch
        %265 = sbr.rel (%p262) target = $region12
      $region11: #{tpu_custom_call.1} parent=5 // pred_region
        %s266 = ssub.s32 %s22, 1
        // Predicated region
        $region13: #{tpu_custom_call.1} parent=11 // pred_check
          %p267 = pneg %p55
        $region14: #{tpu_custom_call.1} parent=11 // pred_check_branch
          %269 = sbr.rel (%p267) target = $region16
        $region15: #{tpu_custom_call.1} parent=11 // pred_region
          _
        $region16: #{tpu_custom_call.1} parent=11 // pred_fallthru
          _
        // Predicated region
        $region17: #{tpu_custom_call.1} parent=11 // pred_check
          %p270 = pneg %p76
        $region18: #{tpu_custom_call.1} parent=11 // pred_check_branch
          %272 = sbr.rel (%p270) target = $region20
        $region19: #{tpu_custom_call.1} parent=11 // pred_region
          _
        $region20: #{tpu_custom_call.1} parent=11 // pred_fallthru
          _
        // Predicated region
        $region21: #{tpu_custom_call.1} parent=11 // pred_check
          %p273 = pneg %p151
        $region22: #{tpu_custom_call.1} parent=11 // pred_check_branch
          %275 = sbr.rel (%p273) target = $region24
        $region23: #{tpu_custom_call.1} parent=11 // pred_region
          _
        $region24: #{tpu_custom_call.1} parent=11 // pred_fallthru
          _
        // Predicated region
        $region25: #{tpu_custom_call.1} parent=11 // pred_check
          %p276 = pneg %p172
        $region26: #{tpu_custom_call.1} parent=11 // pred_check_branch
          %278 = sbr.rel (%p276) target = $region28
        $region27: #{tpu_custom_call.1} parent=11 // pred_region
          _
        $region28: #{tpu_custom_call.1} parent=11 // pred_fallthru
          _
      $region12: #{tpu_custom_call.1} parent=5 // pred_fallthru
        _
      %p279 = scmp.lt.s32.totalorder %s22, 2
      // Predicated region
      $region29: #{tpu_custom_call.1} parent=5 // pred_check
        %p280 = pneg %p279
      $region30: #{tpu_custom_call.1} parent=5 // pred_check_branch
        %282 = sbr.rel (%p280) target = $region32
      $region31: #{tpu_custom_call.1} parent=5 // pred_region
        // Predicated region
        $region33: #{tpu_custom_call.1} parent=31 // pred_check
          %p283 = pneg %p96
        $region34: #{tpu_custom_call.1} parent=31 // pred_check_branch
          %285 = sbr.rel (%p283) target = $region36
        $region35: #{tpu_custom_call.1} parent=31 // pred_region
          %p286 = scmp.lt.s32.totalorder %s29, 1
          %s287 = scalar_select %p286, %s29, 1
          %s288 = scalar_lea.vmem %s2, %s287
        $region36: #{tpu_custom_call.1} parent=31 // pred_fallthru
          _
        // Predicated region
        $region37: #{tpu_custom_call.1} parent=31 // pred_check
          %p289 = pneg %p124
        $region38: #{tpu_custom_call.1} parent=31 // pred_check_branch
          %291 = sbr.rel (%p289) target = $region40
        $region39: #{tpu_custom_call.1} parent=31 // pred_region
          %p292 = scmp.lt.s32.totalorder %s29, 1
          %s293 = scalar_select %p292, %s29, 1
          %p294 = scmp.lt.s32.totalorder %s30, 0
          %s295 = scalar_select %p294, %s30, 0
          %s296 = smul.addr %s293, 6
          %s297 = sadd.s32 %s295, %s296
          %s298 = smul.addr %s297, 4
          %s299 = scalar_lea.vmem %s3, %s298
        $region40: #{tpu_custom_call.1} parent=31 // pred_fallthru
          _
      $region32: #{tpu_custom_call.1} parent=5 // pred_fallthru
        _
      %p300 = scmp.le.s32.totalorder 1, %s22
      %p301 = scmp.lt.s32.totalorder %s22, 3
      %p302 = pnand %p300, %p301
      %p303 = pneg %p302
      // Predicated region
      $region41: #{tpu_custom_call.1} parent=5 // pred_check
        _
      $region42: #{tpu_custom_call.1} parent=5 // pred_check_branch
        %305 = sbr.rel (%p302) target = $region44
      $region43: #{tpu_custom_call.1} parent=5 // pred_region
        %s306 = ssub.s32 %s22, 1
        %p307 = pneg %p55
        %p308 = pneg %p52
        %p309 = pneg %p76
        %p310 = pneg %p73
        %p311 = scmp.lt.s32.totalorder %s31, 1
        %s312 = scalar_select %p311, %s31, 1
        %s313 = scalar_lea.vmem %s2, %s312
        %p314 = pneg %p102
        %p315 = pneg %p99
        %p316 = scmp.lt.s32.totalorder %s31, 1
        %s317 = scalar_select %p316, %s31, 1
        %p318 = scmp.lt.s32.totalorder %s32, 0
        %s319 = scalar_select %p318, %s32, 0
        %s320 = smul.addr %s317, 6
        %s321 = sadd.s32 %s319, %s320
        %s322 = smul.addr %s321, 4
        %s323 = scalar_lea.vmem %s3, %s322
        %p324 = pneg %p130
        %p325 = pneg %p127
        %p326 = pneg %p151
        %p327 = pneg %p148
        %p328 = pneg %p172
        %p329 = pneg %p169
        %p330 = pneg %p200
        %p331 = pneg %p197
        %s332 = sand.u32 %s187, 1
        %s333 = scalar_lea.sflag [#allocation8], %s332
        %s334 = sand.u32 %s187, 1
        %s335 = smul.addr %s334, 8
        %s336 = scalar_lea.vmem [#allocation7], %s335
        %p337 = pneg %p226
        %p338 = pneg %p223
        %p339 = scmp.lt.s32.totalorder %s31, 1
        %s340 = scalar_select %p339, %s31, 1
        %s341 = smul.addr %s340, 8
        %s342 = scalar_lea.vmem %s7, %s341
        %p343 = pneg %p252
        %p344 = pneg %p249
        %p345 = scmp.lt.s32.totalorder %s31, 1
        %s346 = scalar_select %p345, %s31, 1
        %s347 = smul.addr %s346, 8
        %s348 = scalar_lea.vmem %s8, %s347
        %p349 = scmp.lt.s32.totalorder %s31, 1
        %s350 = scalar_select %p349, %s31, 1
        %s351 = scalar_lea.vmem %s2, %s350
        %p352 = scmp.lt.s32.totalorder %s31, 1
        %s353 = scalar_select %p352, %s31, 1
        %p354 = scmp.lt.s32.totalorder %s32, 0
        %s355 = scalar_select %p354, %s32, 0
        %s356 = smul.addr %s353, 6
        %s357 = sadd.s32 %s355, %s356
        %s358 = smul.addr %s357, 4
        %s359 = scalar_lea.vmem %s3, %s358
        %p360 = scmp.lt.s32.totalorder %s31, 1
        %s361 = scalar_select %p360, %s31, 1
        %s362 = smul.addr %s361, 8
        %s363 = scalar_lea.vmem %s7, %s362
        %p364 = scmp.lt.s32.totalorder %s31, 1
        %s365 = scalar_select %p364, %s31, 1
        %s366 = smul.addr %s365, 8
        %s367 = scalar_lea.vmem %s8, %s366
        %p369 = scmp.eq.s32.totalorder %s32, 0
        // Predicated region
        $region45: #{tpu_custom_call.1} parent=43 // pred_check
          %p370 = pneg %p369
        $region46: #{tpu_custom_call.1} parent=43 // pred_check_branch
          %372 = sbr.rel (%p370) target = $region48
        $region47: #{tpu_custom_call.1} parent=43 // pred_region
          %v373 = vld [vmem:[%s351] sm:$0x1]
          %v374 = vld [vmem:[#allocation5] sm:$0x1]
          %376 = vset.pattern.permute.xlu0 0
          %377 = vperm.xlu0 %376, %v374
          %v378 = vpop.permute.xlu0 %377
          %v380 = vlaneseq
          %v381 = vshrl.u32 %v380, 7
          %v382 = vsub.s32 0, %v381
          %v383 = vrot.slane %v378, %v382
          %v384 = vmul.f32 %v373, %v383
          %v385 = vld [vmem:[#allocation6] sm:$0x1]
          %387 = vset.pattern.permute.xlu0 0
          %388 = vperm.xlu0 %387, %v385
          %v389 = vpop.permute.xlu0 %388
          %v391 = vlaneseq
          %v392 = vshrl.u32 %v391, 7
          %v393 = vsub.s32 0, %v392
          %v394 = vrot.slane %v389, %v393
          %v395 = vadd.f32 %v384, %v394
          %v396 = vld [vmem:[%s4] sm:$0xff]
          %398 = vset.pattern.permute.xlu0 0
          %399 = vperm.xlu0 %398, %v396
          %v400 = vpop.permute.xlu0 %399
          %v403 = vlaneseq
          %v404 = vshrl.u32 %v403, 7
          %v405 = vsub.s32 0, %v404
          %v406 = vrot.slane %v395, %v405
          %v408 = vmul.f32 %v400, %v406
          %s409 = scalar_lea.vmem %s4, 8
          %v410 = vld [vmem:[%s409] sm:$0xff]
          %412 = vset.pattern.permute.xlu0 0
          %413 = vperm.xlu0 %412, %v410
          %v414 = vpop.permute.xlu0 %413
          %v416 = vmul.f32 %v414, %v406
          %s417 = scalar_lea.vmem %s4, 16
          %v418 = vld [vmem:[%s417] sm:$0xff]
          %420 = vset.pattern.permute.xlu0 0
          %421 = vperm.xlu0 %420, %v418
          %v422 = vpop.permute.xlu0 %421
          %v424 = vmul.f32 %v422, %v406
          %426 = vrot.lane.b32.xlu0 %v416, 16
          %v427 = vpop.permute.xlu0 %426
          %430 = vrot.lane.b32.xlu0 %v424, 32
          %v431 = vpop.permute.xlu0 %430
          %vm433 = vcmask 130048
          %v434 = vsel %vm433, %v408, %v427
          %vm435 = vcmask 261120
          %v436 = vsel %vm435, %v434, %v431
          %v437 = vpack.c.bf16 %v436, %v436
          %vm438 = vcmask 388096
          %439 = vst.msk [vmem:[#allocation2] sm:$0xf] %vm438, %v437
          %vm440 = vcmask 7168
          %441 = vst.msk [vmem:[#allocation3] sm:$0xff] %vm440, 0.0
          %442 = vst.msk [vmem:[#allocation4] sm:$0xff] %vm440, 0.0
        $region48: #{tpu_custom_call.1} parent=43 // pred_fallthru
          _
        %v443 = vld [vmem:[#allocation2] sm:$0xf]
        %v444 = vld [vmem:[%s359] sm:$0xf]
        %v445 = vld [vmem:[%s359 + $0x4] sm:$0xf]
        %v446 = vld [vmem:[%s359 + $0x8] sm:$0xf]
        %v447 = vld [vmem:[%s359 + $0xc] sm:$0xf]
        %v448 = vld [vmem:[%s359 + $0x10] sm:$0xf]
        %v449 = vld [vmem:[%s359 + $0x14] sm:$0xf]
        %v450 = vld [vmem:[%s5] sm:$0xff]
        %452 = vset.pattern.permute.xlu0 0
        %453 = vperm.xlu0 %452, %v450
        %v454 = vpop.permute.xlu0 %453
        %v462 = vunpack.c.l.b16 %v444
        %v463 = vunpack.c.l.b16 %v445
        %v464 = vunpack.c.l.b16 %v446
        %v465 = vunpack.c.l.b16 %v447
        %v466 = vunpack.c.l.b16 %v448
        %v467 = vunpack.c.l.b16 %v449
        %v468 = vpack.c.b16 %v463, %v462
        %v469 = vpack.c.b16 %v465, %v464
        %v470 = vpack.c.b16 %v467, %v466
        %vm474 = vcmask 392192
        %v476 = vsel %vm474, %v443, 0
        %478 = vmatprep.subr.bf16.mxu0 0
        %479 = vmatpush1.bf16.msra.mxu0 0
        %480 = vmatprep.subr.bf16.mxu0 0
        %481 = vmatpush1.bf16.msra.mxu0 0
        %482 = vmatprep.subr.bf16.mxu0 0
        %483 = vmatpush1.bf16.msra.mxu0 0
        %484 = vmatprep.subr.bf16.mxu0 0
        %485 = vmatpush1.bf16.msra.mxu0 0
        %486 = vmatprep.subr.bf16.mxu0 0
        %487 = vmatpush1.bf16.msra.mxu0 0
        %488 = vmatprep.subr.bf16.mxu0 0
        %489 = vmatpush1.bf16.msra.mxu0 %v470
        %490 = vmatprep.subr.bf16.mxu0 0
        %491 = vmatpush1.bf16.msra.mxu0 %v469
        %492 = vmatprep.subr.bf16.mxu0 0
        %493 = vmatpush1.bf16.msra.mxu0 %v468
        %494 = vmatprep.subr.bf16.mxu0 0
        %495 = vmatpush2.bf16.msra.mxu0 0
        %496 = vmatprep.subr.bf16.mxu0 0
        %497 = vmatpush2.bf16.msra.mxu0 0
        %498 = vmatprep.subr.bf16.mxu0 0
        %499 = vmatpush2.bf16.msra.mxu0 0
        %500 = vmatprep.subr.bf16.mxu0 0
        %501 = vmatpush2.bf16.msra.mxu0 0
        %502 = vmatprep.subr.bf16.mxu0 0
        %503 = vmatpush2.bf16.msra.mxu0 0
        %504 = vmatprep.subr.bf16.mxu0 0
        %505 = vmatpush2.bf16.msra.mxu0 0
        %506 = vmatprep.subr.bf16.mxu0 0
        %507 = vmatpush2.bf16.msra.mxu0 0
        %508 = vmatprep.subr.bf16.mxu0 0
        %509 = vmatpush2.bf16.msra.mxu0 0
        %510 = vmatprep.mubr.bf16.mxu0 0
        %511 = vmatmul.mubr.bf16.gmra.mxu0 %v476
        %v512 = vpop.f32.mrf.mxu0
        %v513 = vadd.f32 %v454, %v512
        %v514 = vpop.f32.mrf.mxu0
        %v515 = vpop.f32.mrf.mxu0
        %v516 = vpop.f32.mrf.mxu0
        %517 = vdwg.mxu0
        %v518 = vlaneseq
        %v519 = vshrl.u32 %v518, 7
        %vm520 = vcmp.lt.s32.totalorder %v519, 4
        %v521 = vmax.f32 %v513, 0.0
        %v522 = vsel %vm520, %v521, %v513
        %vm523 = vcmask 130048
        %524 = vst.msk [vmem:[%s336] sm:$0xff] %vm523, %v522
        %v525 = vld [vmem:[#allocation3] sm:$0xff]
        %v526 = vsel %vm523, %v522, 0.0
        %527 = vadd.xlane.f32.xlu0 %v526
        %v528 = vpop.xlane.xlu0 %527
        %v529 = vadd.f32 %v525, %v528
        %vm530 = vcmask 7168
        %531 = vst.msk [vmem:[#allocation3] sm:$0xff] %vm530, %v529
        %v532 = vld [vmem:[#allocation4] sm:$0xff]
        %v533 = vmul.f32 %v522, %v522
        %v534 = vsel %vm523, %v533, 0.0
        %535 = vadd.xlane.f32.xlu0 %v534
        %v536 = vpop.xlane.xlu0 %535
        %v537 = vadd.f32 %v532, %v536
        %538 = vst.msk [vmem:[#allocation4] sm:$0xff] %vm530, %v537
        // Predicated region
        $region49: #{tpu_custom_call.1} parent=43 // pred_check
          %p539 = pneg %p369
        $region50: #{tpu_custom_call.1} parent=43 // pred_check_branch
          %541 = sbr.rel (%p539) target = $region52
        $region51: #{tpu_custom_call.1} parent=43 // pred_region
          %v542 = vld [vmem:[#allocation3] sm:$0xff]
          %543 = vst.msk [vmem:[%s363] sm:$0xff] %vm530, %v542
          %v544 = vld [vmem:[#allocation4] sm:$0xff]
          %545 = vst.msk [vmem:[%s367] sm:$0xff] %vm530, %v544
        $region52: #{tpu_custom_call.1} parent=43 // pred_fallthru
          _
        %s546 = sand.u32 %s187, 1
        %s547 = scalar_lea.sflag [#allocation8], %s546
        %s548 = sand.u32 %s187, 1
        %s549 = smul.addr %s548, 8
        %s550 = scalar_lea.vmem [#allocation7], %s549
        %p551 = scmp.lt.s32.totalorder %s31, 1
        %s552 = scalar_select %p551, %s31, 1
        %s553 = smul.addr %s552, 8
        %s554 = scalar_lea.vmem %s7, %s553
        %p555 = scmp.lt.s32.totalorder %s31, 1
        %s556 = scalar_select %p555, %s31, 1
        %s557 = smul.addr %s556, 8
        %s558 = scalar_lea.vmem %s8, %s557
        // Predicated region
        $region53: #{tpu_custom_call.1} parent=43 // pred_check
          %p559 = pneg %p197
        $region54: #{tpu_custom_call.1} parent=43 // pred_check_branch
          %561 = sbr.rel (%p559) target = $region56
        $region55: #{tpu_custom_call.1} parent=43 // pred_region
          %s563 = ssub.s32 128, 128
          %564 = vsyncadd %s547, %s563
          %s565 = sadd.s32 %s32, %s31
          %s566 = smul.addr %s565, 128
          %s567 = scalar_lea.hbm %s6, %s566
          %s569 = sshll.u32 %s550, 4
          %s570 = int_to_ptr.vmem [resolvable:$true] %s569
          %572 = dma.vmem_to_hbm [thread:$0]  %s570, 128, %s567, %s547
        $region56: #{tpu_custom_call.1} parent=43 // pred_fallthru
          _
        // Predicated region
        $region57: #{tpu_custom_call.1} parent=43 // pred_check
          %p573 = pneg %p223
        $region58: #{tpu_custom_call.1} parent=43 // pred_check_branch
          %575 = sbr.rel (%p573) target = $region60
        $region59: #{tpu_custom_call.1} parent=43 // pred_region
          _
        $region60: #{tpu_custom_call.1} parent=43 // pred_fallthru
          _
        // Predicated region
        $region61: #{tpu_custom_call.1} parent=43 // pred_check
          %p576 = pneg %p249
        $region62: #{tpu_custom_call.1} parent=43 // pred_check_branch
          %578 = sbr.rel (%p576) target = $region64
        $region63: #{tpu_custom_call.1} parent=43 // pred_region
          _
        $region64: #{tpu_custom_call.1} parent=43 // pred_fallthru
          _
      $region44: #{tpu_custom_call.1} parent=5 // pred_fallthru
        _
      %p579 = scmp.le.s32.totalorder 2, %s22
      // Predicated region
      $region65: #{tpu_custom_call.1} parent=5 // pred_check
        %p580 = pneg %p579
      $region66: #{tpu_custom_call.1} parent=5 // pred_check_branch
        %582 = sbr.rel (%p580) target = $region68
      $region67: #{tpu_custom_call.1} parent=5 // pred_region
        %s583 = ssub.s32 %s22, 2
        // Predicated region
        $region69: #{tpu_custom_call.1} parent=67 // pred_check
          %p584 = pneg %p203
        $region70: #{tpu_custom_call.1} parent=67 // pred_check_branch
          %586 = sbr.rel (%p584) target = $region72
        $region71: #{tpu_custom_call.1} parent=67 // pred_region
          %s587 = sand.u32 %s188, 1
          %s588 = scalar_lea.sflag [#allocation8], %s587
          %s589 = sand.u32 %s188, 1
          %s590 = smul.addr %s589, 8
          %s591 = scalar_lea.vmem [#allocation7], %s590
          %592 = dma.done %s588, 128
        $region72: #{tpu_custom_call.1} parent=67 // pred_fallthru
          _
        // Predicated region
        $region73: #{tpu_custom_call.1} parent=67 // pred_check
          %p593 = pneg %p229
        $region74: #{tpu_custom_call.1} parent=67 // pred_check_branch
          %595 = sbr.rel (%p593) target = $region76
        $region75: #{tpu_custom_call.1} parent=67 // pred_region
          %p596 = scmp.lt.s32.totalorder %s33, 1
          %s597 = scalar_select %p596, %s33, 1
          %s598 = smul.addr %s597, 8
          %s599 = scalar_lea.vmem %s7, %s598
        $region76: #{tpu_custom_call.1} parent=67 // pred_fallthru
          _
        // Predicated region
        $region77: #{tpu_custom_call.1} parent=67 // pred_check
          %p600 = pneg %p255
        $region78: #{tpu_custom_call.1} parent=67 // pred_check_branch
          %602 = sbr.rel (%p600) target = $region80
        $region79: #{tpu_custom_call.1} parent=67 // pred_region
          %p603 = scmp.lt.s32.totalorder %s33, 1
          %s604 = scalar_select %p603, %s33, 1
          %s605 = smul.addr %s604, 8
          %s606 = scalar_lea.vmem %s8, %s605
        $region80: #{tpu_custom_call.1} parent=67 // pred_fallthru
          _
      $region68: #{tpu_custom_call.1} parent=5 // pred_fallthru
        _
    $region6: #{tpu_custom_call.1} parent=1 // loop_footer
      %s26 = sadd.s32 1, %s22
    $region7: #{tpu_custom_call.1} parent=1 // loop_footer_branch
      %21 = sbr.rel target = $region3
    $region8: #{tpu_custom_call.1} parent=1 // loop_exit
      _
    %607 = vsyncpa [#allocation8], 1
    %s608 = scalar_lea.sflag [#allocation8], 1
    %609 = vsyncpa %s608, 1

</llo_original>
